<compile_context>
chip_gen: v6e
topology: v6e:2x2x1
jax: 0.10.0
libtpu: 0.0.40
codegen_flags: <defaults>
</compile_context>

<pallas_src>
import functools

import jax
import jax.numpy as jnp
from jax.experimental import pallas as pl
from jax.experimental.pallas import tpu as pltpu


def _conv_encoder_layer_kernel(
    x_ref,          # (Bt, L, C) unpadded input tile (channels on the lane axis)
    w_dw_ref,       # (K, C)  merged depthwise weight, w[k, c] = torch_weight[c, 0, k]
    b_dw_ref,       # (1, C)  merged depthwise bias
    scale_x_ref,    # (1, C)  bn1 eval scale  = gamma / sqrt(running_var + eps)
    scale_dw_ref,   # (1, C)  a1 * bn1 scale  (residual coefficient folded on host)
    shift_ref,      # (1, C)  bn1 eval shift  = beta - running_mean * scale
    out_ref,        # (Bt, L, C)
    xp_ref,         # VMEM scratch (Bt, L + K - 1, C): "same"-padded copy of the tile
    *, K,
):
    Bt, L, C = x_ref.shape
    pad_l = (K - 1) // 2
    pad_r = K - 1 - pad_l

    x = x_ref[...]

    # Build the zero-padded window in VMEM (only the K-1 halo rows are zeroed;
    # the padded activation never exists in HBM).
    if pad_l:
        xp_ref[:, :pad_l, :] = jnp.zeros((Bt, pad_l, C), x.dtype)
    if pad_r:
        xp_ref[:, pad_l + L:, :] = jnp.zeros((Bt, pad_r, C), x.dtype)
    xp_ref[:, pad_l:pad_l + L, :] = x

    # Depthwise "same" conv with the merged (large + center-padded small) kernel:
    # K static sublane-offset taps, fully unrolled VPU FMAs from the VMEM scratch.
    acc = jnp.zeros_like(x) + b_dw_ref[0, :]
    for k in range(K):
        acc = acc + xp_ref[:, k:k + L, :] * w_dw_ref[k, :]
    dw = jnp.maximum(acc, 0.0)            # relu activation

    # sublayerconnect1 (+a1) fused with BatchNorm1d eval affine:
    #   out = bn_scale * (x + a1 * dw) + bn_shift
    out_ref[...] = (x * scale_x_ref[0, :]
                    + dw * scale_dw_ref[0, :]
                    + shift_ref[0, :])


def _pick_batch_tile(B, L, C, K, vmem_budget_bytes=8 * 1024 * 1024):
    """Largest divisor of B whose double-buffered in/out + scratch fits the budget."""
    Lp = L + K - 1
    bytes_per_batch = 4 * (2 * L * C      # input block (double-buffered)
                           + 2 * L * C    # output block (double-buffered)
                           + Lp * C)      # padded VMEM scratch (single)
    bt = int(max(1, min(B, vmem_budget_bytes // max(bytes_per_batch, 1))))
    while B % bt:
        bt -= 1
    return bt


def conv_encoder_layer_forward(x_bcl, params):
    """x_bcl: (B, C, L) float32, same layout as the PyTorch module. Returns (B, C, L)."""
    B, C, L = x_bcl.shape
    K = params["w_dw"].shape[0]
    Lp = L + K - 1

    # Channels-last for the kernel: channels on lanes, sequence on sublanes.
    x_blc = jnp.transpose(x_bcl, (0, 2, 1))                     # (B, L, C)

    Bt = _pick_batch_tile(B, L, C, K)
    grid = (B // Bt,)

    kernel = functools.partial(_conv_encoder_layer_kernel, K=K)
    bmap = lambda b: (b, 0, 0)
    pmap = lambda b: (0, 0)

    out = pl.pallas_call(
        kernel,
        grid=grid,
        in_specs=[
            pl.BlockSpec((Bt, L, C), bmap),   # unpadded input tile
            pl.BlockSpec((K, C), pmap),       # merged DW weight
            pl.BlockSpec((1, C), pmap),       # merged DW bias
            pl.BlockSpec((1, C), pmap),       # bn1 scale
            pl.BlockSpec((1, C), pmap),       # a1 * bn1 scale
            pl.BlockSpec((1, C), pmap),       # bn1 shift
        ],
        out_specs=pl.BlockSpec((Bt, L, C), bmap),
        out_shape=jax.ShapeDtypeStruct((B, L, C), jnp.float32),
        scratch_shapes=[pltpu.VMEM((Bt, Lp, C), jnp.float32)],
        compiler_params=pltpu.CompilerParams(
            dimension_semantics=("parallel",)),
    )(
        x_blc, params["w_dw"], params["b_dw"],
        params["scale_x"], params["scale_dw"], params["shift"],
    )
    return jnp.transpose(out, (0, 2, 1))                        # back to (B, C, L)


def make_params(key, d_model, large_ks, small_ks, eps=1e-5):
    """Only the parameters that influence the returned tensor.

    The ff / sublayerconnect2 / norm_ffn parameters of the torch module are
    intentionally absent: the module returns `src`, so that branch is dead.
    """
    C, K = d_model, large_ks
    ks = jax.random.split(key, 8)

    # Depthwise convs (torch Conv1d weight shape: (C, 1, kernel))
    w_large = 0.1 * jax.random.normal(ks[0], (C, 1, K), jnp.float32)
    b_large = 0.1 * jax.random.normal(ks[1], (C,), jnp.float32)
    w_small = 0.1 * jax.random.normal(ks[2], (C, 1, small_ks), jnp.float32)
    b_small = 0.1 * jax.random.normal(ks[3], (C,), jnp.float32)
    left = (K - small_ks) // 2
    right = K - small_ks - left
    w_merged = w_large + jnp.pad(w_small, ((0, 0), (0, 0), (left, right)))   # _get_merge_param
    b_merged = b_large + b_small

    # BatchNorm1d (dw_norm) eval-mode parameters.
    g1 = 1.0 + 0.1 * jax.random.normal(ks[4], (C,), jnp.float32)
    be1 = 0.1 * jax.random.normal(ks[5], (C,), jnp.float32)
    rm1 = 0.1 * jax.random.normal(ks[6], (C,), jnp.float32)
    rv1 = 1.0 + 0.1 * jnp.abs(jax.random.normal(ks[7], (C,), jnp.float32))
    bn1_scale = g1 / jnp.sqrt(rv1 + eps)
    bn1_shift = be1 - rm1 * bn1_scale

    a1 = jnp.float32(0.5)                      # nn.Parameter(torch.tensor(0.5))

    return {
        "w_merged_ncl": w_merged,              # for the pure-JAX reference
        "a1": a1,
        "bn1_scale": bn1_scale.reshape(1, C),
        "bn1_shift": bn1_shift.reshape(1, C),
        # kernel inputs
        "w_dw": jnp.transpose(w_merged[:, 0, :], (1, 0)),        # (K, C)
        "b_dw": b_merged.reshape(1, C),
        "scale_x": bn1_scale.reshape(1, C),
        "scale_dw": (a1 * bn1_scale).reshape(1, C),
        "shift": bn1_shift.reshape(1, C),
    }


def reference_forward(x_bcl, params):
    """Pure-JAX reference of the returned value (src), PyTorch layout (B, C, L)."""
    C = x_bcl.shape[1]
    conv = jax.lax.conv_general_dilated(
        x_bcl, params["w_merged_ncl"], window_strides=(1,), padding="SAME",
        dimension_numbers=("NCH", "OIH", "NCH"), feature_group_count=C,
    ) + params["b_dw"][0][None, :, None]
    dw = jnp.maximum(conv, 0.0)
    src1 = x_bcl + params["a1"] * dw
    return (src1 * params["bn1_scale"][0][None, :, None]
            + params["bn1_shift"][0][None, :, None])


if __name__ == "__main__":
    B, d_model, L = 2, 32, 16
    large_ks, small_ks = 9, 3

    key = jax.random.PRNGKey(0)
    k_x, k_p = jax.random.split(key)
    x = jax.random.normal(k_x, (B, d_model, L), jnp.float32)     # torch layout (B, C, L)
    params = make_params(k_p, d_model, large_ks, small_ks)

    out = jax.block_until_ready(conv_encoder_layer_forward(x, params))
    ref = jax.block_until_ready(reference_forward(x, params))

    assert out.shape == (B, d_model, L)
    assert jnp.allclose(out, ref, atol=1e-5, rtol=1e-5), float(jnp.max(jnp.abs(out - ref)))
    print("KERNEL_OK")
</pallas_src>

<mosaic_0001>
module attributes {stable_mosaic.version = 11 : i64} {
  func.func @_conv_encoder_layer_kernel(%arg0: i32, %arg1: memref<2x16x32xf32, #tpu.memory_space<vmem>>, %arg2: memref<9x32xf32, #tpu.memory_space<vmem>>, %arg3: memref<1x32xf32, #tpu.memory_space<vmem>>, %arg4: memref<1x32xf32, #tpu.memory_space<vmem>>, %arg5: memref<1x32xf32, #tpu.memory_space<vmem>>, %arg6: memref<1x32xf32, #tpu.memory_space<vmem>>, %arg7: memref<2x16x32xf32, #tpu.memory_space<vmem>>, %arg8: memref<2x24x32xf32, #tpu.memory_space<vmem>>) attributes {dimension_semantics = [#tpu.dimension_semantics<parallel>], iteration_bounds = array<i64: 1>, scalar_prefetch = 0 : i64, scratch_operands = 1 : i64, tpu.core_type = #tpu.core_type<tc>, window_params = [{transform_indices = @transform_0, window_bounds = array<i64: 2, 16, 32>}, {pipeline_mode = #tpu.pipeline_mode<synchronous>, transform_indices = @transform_1, window_bounds = array<i64: 9, 32>}, {pipeline_mode = #tpu.pipeline_mode<synchronous>, transform_indices = @transform_2, window_bounds = array<i64: 1, 32>}, {pipeline_mode = #tpu.pipeline_mode<synchronous>, transform_indices = @transform_3, window_bounds = array<i64: 1, 32>}, {pipeline_mode = #tpu.pipeline_mode<synchronous>, transform_indices = @transform_4, window_bounds = array<i64: 1, 32>}, {pipeline_mode = #tpu.pipeline_mode<synchronous>, transform_indices = @transform_5, window_bounds = array<i64: 1, 32>}, {transform_indices = @transform_6, window_bounds = array<i64: 2, 16, 32>}]} {
    %c0 = arith.constant 0 : index
    %c0_0 = arith.constant 0 : index
    %c0_1 = arith.constant 0 : index
    %0 = vector.load %arg1[%c0, %c0_0, %c0_1] : memref<2x16x32xf32, #tpu.memory_space<vmem>>, vector<2x16x32xf32>
    %cst = arith.constant 0.000000e+00 : f32
    %1 = vector.broadcast %cst : f32 to vector<2x4x32xf32>
    %c0_2 = arith.constant 0 : index
    %c0_3 = arith.constant 0 : index
    %c0_4 = arith.constant 0 : index
    %2 = vector.load %arg8[%c0_2, %c0_3, %c0_4] : memref<2x24x32xf32, #tpu.memory_space<vmem>>, vector<2x4x32xf32>
    tpu.vector_store %arg8[%c0_2, %c0_3, %c0_4], %1 {strides = array<i32>} : memref<2x24x32xf32, #tpu.memory_space<vmem>>, vector<2x4x32xf32>,
    %cst_5 = arith.constant 0.000000e+00 : f32
    %3 = vector.broadcast %cst_5 : f32 to vector<2x4x32xf32>
    %c0_6 = arith.constant 0 : index
    %c20 = arith.constant 20 : index
    %c0_7 = arith.constant 0 : index
    %4 = vector.load %arg8[%c0_6, %c20, %c0_7] : memref<2x24x32xf32, #tpu.memory_space<vmem>>, vector<2x4x32xf32>
    tpu.vector_store %arg8[%c0_6, %c20, %c0_7], %3 {strides = array<i32>} : memref<2x24x32xf32, #tpu.memory_space<vmem>>, vector<2x4x32xf32>,
    %c0_8 = arith.constant 0 : index
    %c4 = arith.constant 4 : index
    %c0_9 = arith.constant 0 : index
    %5 = vector.load %arg8[%c0_8, %c4, %c0_9] : memref<2x24x32xf32, #tpu.memory_space<vmem>>, vector<2x16x32xf32>
    tpu.vector_store %arg8[%c0_8, %c4, %c0_9], %0 {strides = array<i32>} : memref<2x24x32xf32, #tpu.memory_space<vmem>>, vector<2x16x32xf32>,
    %cst_10 = arith.constant 0.000000e+00 : f32
    %6 = vector.broadcast %cst_10 : f32 to vector<2x16x32xf32>
    %c0_11 = arith.constant 0 : index
    %c0_12 = arith.constant 0 : index
    %7 = vector.load %arg3[%c0_11, %c0_12] : memref<1x32xf32, #tpu.memory_space<vmem>>, vector<1x32xf32>
    %8 = vector.shape_cast %7 : vector<1x32xf32> to vector<32xf32>
    %9 = vector.shape_cast %8 : vector<32xf32> to vector<1x1x32xf32>
    %10 = vector.broadcast %9 : vector<1x1x32xf32> to vector<2x16x32xf32>
    %11 = arith.addf %6, %10 : vector<2x16x32xf32>
    %c0_13 = arith.constant 0 : index
    %c0_14 = arith.constant 0 : index
    %c0_15 = arith.constant 0 : index
    %12 = vector.load %arg8[%c0_13, %c0_14, %c0_15] : memref<2x24x32xf32, #tpu.memory_space<vmem>>, vector<2x16x32xf32>
    %c0_16 = arith.constant 0 : index
    %c0_17 = arith.constant 0 : index
    %13 = vector.load %arg2[%c0_16, %c0_17] : memref<9x32xf32, #tpu.memory_space<vmem>>, vector<1x32xf32>
    %14 = vector.shape_cast %13 : vector<1x32xf32> to vector<32xf32>
    %15 = vector.shape_cast %14 : vector<32xf32> to vector<1x1x32xf32>
    %16 = vector.broadcast %15 : vector<1x1x32xf32> to vector<2x16x32xf32>
    %17 = arith.mulf %12, %16 : vector<2x16x32xf32>
    %18 = arith.addf %11, %17 : vector<2x16x32xf32>
    %c0_18 = arith.constant 0 : index
    %c1 = arith.constant 1 : index
    %c0_19 = arith.constant 0 : index
    %19 = vector.load %arg8[%c0_18, %c1, %c0_19] : memref<2x24x32xf32, #tpu.memory_space<vmem>>, vector<2x16x32xf32>
    %c1_20 = arith.constant 1 : index
    %c0_21 = arith.constant 0 : index
    %20 = vector.load %arg2[%c1_20, %c0_21] : memref<9x32xf32, #tpu.memory_space<vmem>>, vector<1x32xf32>
    %21 = vector.shape_cast %20 : vector<1x32xf32> to vector<32xf32>
    %22 = vector.shape_cast %21 : vector<32xf32> to vector<1x1x32xf32>
    %23 = vector.broadcast %22 : vector<1x1x32xf32> to vector<2x16x32xf32>
    %24 = arith.mulf %19, %23 : vector<2x16x32xf32>
    %25 = arith.addf %18, %24 : vector<2x16x32xf32>
    %c0_22 = arith.constant 0 : index
    %c2 = arith.constant 2 : index
    %c0_23 = arith.constant 0 : index
    %26 = vector.load %arg8[%c0_22, %c2, %c0_23] : memref<2x24x32xf32, #tpu.memory_space<vmem>>, vector<2x16x32xf32>
    %c2_24 = arith.constant 2 : index
    %c0_25 = arith.constant 0 : index
    %27 = vector.load %arg2[%c2_24, %c0_25] : memref<9x32xf32, #tpu.memory_space<vmem>>, vector<1x32xf32>
    %28 = vector.shape_cast %27 : vector<1x32xf32> to vector<32xf32>
    %29 = vector.shape_cast %28 : vector<32xf32> to vector<1x1x32xf32>
    %30 = vector.broadcast %29 : vector<1x1x32xf32> to vector<2x16x32xf32>
    %31 = arith.mulf %26, %30 : vector<2x16x32xf32>
    %32 = arith.addf %25, %31 : vector<2x16x32xf32>
    %c0_26 = arith.constant 0 : index
    %c3 = arith.constant 3 : index
    %c0_27 = arith.constant 0 : index
    %33 = vector.load %arg8[%c0_26, %c3, %c0_27] : memref<2x24x32xf32, #tpu.memory_space<vmem>>, vector<2x16x32xf32>
    %c3_28 = arith.constant 3 : index
    %c0_29 = arith.constant 0 : index
    %34 = vector.load %arg2[%c3_28, %c0_29] : memref<9x32xf32, #tpu.memory_space<vmem>>, vector<1x32xf32>
    %35 = vector.shape_cast %34 : vector<1x32xf32> to vector<32xf32>
    %36 = vector.shape_cast %35 : vector<32xf32> to vector<1x1x32xf32>
    %37 = vector.broadcast %36 : vector<1x1x32xf32> to vector<2x16x32xf32>
    %38 = arith.mulf %33, %37 : vector<2x16x32xf32>
    %39 = arith.addf %32, %38 : vector<2x16x32xf32>
    %c0_30 = arith.constant 0 : index
    %c4_31 = arith.constant 4 : index
    %c0_32 = arith.constant 0 : index
    %40 = vector.load %arg8[%c0_30, %c4_31, %c0_32] : memref<2x24x32xf32, #tpu.memory_space<vmem>>, vector<2x16x32xf32>
    %c4_33 = arith.constant 4 : index
    %c0_34 = arith.constant 0 : index
    %41 = vector.load %arg2[%c4_33, %c0_34] : memref<9x32xf32, #tpu.memory_space<vmem>>, vector<1x32xf32>
    %42 = vector.shape_cast %41 : vector<1x32xf32> to vector<32xf32>
    %43 = vector.shape_cast %42 : vector<32xf32> to vector<1x1x32xf32>
    %44 = vector.broadcast %43 : vector<1x1x32xf32> to vector<2x16x32xf32>
    %45 = arith.mulf %40, %44 : vector<2x16x32xf32>
    %46 = arith.addf %39, %45 : vector<2x16x32xf32>
    %c0_35 = arith.constant 0 : index
    %c5 = arith.constant 5 : index
    %c0_36 = arith.constant 0 : index
    %47 = vector.load %arg8[%c0_35, %c5, %c0_36] : memref<2x24x32xf32, #tpu.memory_space<vmem>>, vector<2x16x32xf32>
    %c5_37 = arith.constant 5 : index
    %c0_38 = arith.constant 0 : index
    %48 = vector.load %arg2[%c5_37, %c0_38] : memref<9x32xf32, #tpu.memory_space<vmem>>, vector<1x32xf32>
    %49 = vector.shape_cast %48 : vector<1x32xf32> to vector<32xf32>
    %50 = vector.shape_cast %49 : vector<32xf32> to vector<1x1x32xf32>
    %51 = vector.broadcast %50 : vector<1x1x32xf32> to vector<2x16x32xf32>
    %52 = arith.mulf %47, %51 : vector<2x16x32xf32>
    %53 = arith.addf %46, %52 : vector<2x16x32xf32>
    %c0_39 = arith.constant 0 : index
    %c6 = arith.constant 6 : index
    %c0_40 = arith.constant 0 : index
    %54 = vector.load %arg8[%c0_39, %c6, %c0_40] : memref<2x24x32xf32, #tpu.memory_space<vmem>>, vector<2x16x32xf32>
    %c6_41 = arith.constant 6 : index
    %c0_42 = arith.constant 0 : index
    %55 = vector.load %arg2[%c6_41, %c0_42] : memref<9x32xf32, #tpu.memory_space<vmem>>, vector<1x32xf32>
    %56 = vector.shape_cast %55 : vector<1x32xf32> to vector<32xf32>
    %57 = vector.shape_cast %56 : vector<32xf32> to vector<1x1x32xf32>
    %58 = vector.broadcast %57 : vector<1x1x32xf32> to vector<2x16x32xf32>
    %59 = arith.mulf %54, %58 : vector<2x16x32xf32>
    %60 = arith.addf %53, %59 : vector<2x16x32xf32>
    %c0_43 = arith.constant 0 : index
    %c7 = arith.constant 7 : index
    %c0_44 = arith.constant 0 : index
    %61 = vector.load %arg8[%c0_43, %c7, %c0_44] : memref<2x24x32xf32, #tpu.memory_space<vmem>>, vector<2x16x32xf32>
    %c7_45 = arith.constant 7 : index
    %c0_46 = arith.constant 0 : index
    %62 = vector.load %arg2[%c7_45, %c0_46] : memref<9x32xf32, #tpu.memory_space<vmem>>, vector<1x32xf32>
    %63 = vector.shape_cast %62 : vector<1x32xf32> to vector<32xf32>
    %64 = vector.shape_cast %63 : vector<32xf32> to vector<1x1x32xf32>
    %65 = vector.broadcast %64 : vector<1x1x32xf32> to vector<2x16x32xf32>
    %66 = arith.mulf %61, %65 : vector<2x16x32xf32>
    %67 = arith.addf %60, %66 : vector<2x16x32xf32>
    %c0_47 = arith.constant 0 : index
    %c8 = arith.constant 8 : index
    %c0_48 = arith.constant 0 : index
    %68 = vector.load %arg8[%c0_47, %c8, %c0_48] : memref<2x24x32xf32, #tpu.memory_space<vmem>>, vector<2x16x32xf32>
    %c8_49 = arith.constant 8 : index
    %c0_50 = arith.constant 0 : index
    %69 = vector.load %arg2[%c8_49, %c0_50] : memref<9x32xf32, #tpu.memory_space<vmem>>, vector<1x32xf32>
    %70 = vector.shape_cast %69 : vector<1x32xf32> to vector<32xf32>
    %71 = vector.shape_cast %70 : vector<32xf32> to vector<1x1x32xf32>
    %72 = vector.broadcast %71 : vector<1x1x32xf32> to vector<2x16x32xf32>
    %73 = arith.mulf %68, %72 : vector<2x16x32xf32>
    %74 = arith.addf %67, %73 : vector<2x16x32xf32>
    %cst_51 = arith.constant 0.000000e+00 : f32
    %75 = vector.broadcast %cst_51 : f32 to vector<2x16x32xf32>
    %76 = arith.maximumf %74, %75 : vector<2x16x32xf32>
    %c0_52 = arith.constant 0 : index
    %c0_53 = arith.constant 0 : index
    %77 = vector.load %arg4[%c0_52, %c0_53] : memref<1x32xf32, #tpu.memory_space<vmem>>, vector<1x32xf32>
    %78 = vector.shape_cast %77 : vector<1x32xf32> to vector<32xf32>
    %79 = vector.shape_cast %78 : vector<32xf32> to vector<1x1x32xf32>
    %80 = vector.broadcast %79 : vector<1x1x32xf32> to vector<2x16x32xf32>
    %81 = arith.mulf %0, %80 : vector<2x16x32xf32>
    %c0_54 = arith.constant 0 : index
    %c0_55 = arith.constant 0 : index
    %82 = vector.load %arg5[%c0_54, %c0_55] : memref<1x32xf32, #tpu.memory_space<vmem>>, vector<1x32xf32>
    %83 = vector.shape_cast %82 : vector<1x32xf32> to vector<32xf32>
    %84 = vector.shape_cast %83 : vector<32xf32> to vector<1x1x32xf32>
    %85 = vector.broadcast %84 : vector<1x1x32xf32> to vector<2x16x32xf32>
    %86 = arith.mulf %76, %85 : vector<2x16x32xf32>
    %87 = arith.addf %81, %86 : vector<2x16x32xf32>
    %c0_56 = arith.constant 0 : index
    %c0_57 = arith.constant 0 : index
    %88 = vector.load %arg6[%c0_56, %c0_57] : memref<1x32xf32, #tpu.memory_space<vmem>>, vector<1x32xf32>
    %89 = vector.shape_cast %88 : vector<1x32xf32> to vector<32xf32>
    %90 = vector.shape_cast %89 : vector<32xf32> to vector<1x1x32xf32>
    %91 = vector.broadcast %90 : vector<1x1x32xf32> to vector<2x16x32xf32>
    %92 = arith.addf %87, %91 : vector<2x16x32xf32>
    %c0_58 = arith.constant 0 : index
    %c0_59 = arith.constant 0 : index
    %c0_60 = arith.constant 0 : index
    %93 = vector.load %arg7[%c0_58, %c0_59, %c0_60] : memref<2x16x32xf32, #tpu.memory_space<vmem>>, vector<2x16x32xf32>
    tpu.vector_store %arg7[%c0_58, %c0_59, %c0_60], %92 {strides = array<i32>} : memref<2x16x32xf32, #tpu.memory_space<vmem>>, vector<2x16x32xf32>,
    return
  }
  func.func @transform_0(%arg0: i32) -> (i32, i32, i32) {
    %c0_i32 = arith.constant 0 : i32
    %c0_i32_0 = arith.constant 0 : i32
    %c0_i32_1 = arith.constant 0 : i32
    return %arg0, %c0_i32, %c0_i32_0 : i32, i32, i32
  }
  func.func @transform_1(%arg0: i32) -> (i32, i32) {
    %c0_i32 = arith.constant 0 : i32
    %c0_i32_0 = arith.constant 0 : i32
    %c0_i32_1 = arith.constant 0 : i32
    return %c0_i32, %c0_i32_0 : i32, i32
  }
  func.func @transform_2(%arg0: i32) -> (i32, i32) {
    %c0_i32 = arith.constant 0 : i32
    %c0_i32_0 = arith.constant 0 : i32
    %c0_i32_1 = arith.constant 0 : i32
    return %c0_i32, %c0_i32_0 : i32, i32
  }
  func.func @transform_3(%arg0: i32) -> (i32, i32) {
    %c0_i32 = arith.constant 0 : i32
    %c0_i32_0 = arith.constant 0 : i32
    %c0_i32_1 = arith.constant 0 : i32
    return %c0_i32, %c0_i32_0 : i32, i32
  }
  func.func @transform_4(%arg0: i32) -> (i32, i32) {
    %c0_i32 = arith.constant 0 : i32
    %c0_i32_0 = arith.constant 0 : i32
    %c0_i32_1 = arith.constant 0 : i32
    return %c0_i32, %c0_i32_0 : i32, i32
  }
  func.func @transform_5(%arg0: i32) -> (i32, i32) {
    %c0_i32 = arith.constant 0 : i32
    %c0_i32_0 = arith.constant 0 : i32
    %c0_i32_1 = arith.constant 0 : i32
    return %c0_i32, %c0_i32_0 : i32, i32
  }
  func.func @transform_6(%arg0: i32) -> (i32, i32, i32) {
    %c0_i32 = arith.constant 0 : i32
    %c0_i32_0 = arith.constant 0 : i32
    %c0_i32_1 = arith.constant 0 : i32
    return %arg0, %c0_i32, %c0_i32_0 : i32, i32, i32
  }
}

</mosaic_0001>

<llo_original>
// kernel: tpu_custom_call.1
$region0: #{tpu_custom_call.1}
  #allocation0 [shape = 'u32[]', space=smem, size = 0x4, offset = 0x4, fixed_abs, tag = 'smem constant byte address 0x4 - core index']
  #allocation1 [shape = 'u32[144,128]{1,0:T(1,128)}', space=vmem, size = 0x12000, scoped, tag = 'internal scratch']
  #allocation2 [shape = 'f32[2,24,32]{2,1,0:T(8,128)}', space=vmem, size = 0x6000, scoped, tag = 'scratch operand']
  %s0 = inlined_call_operand.hbm [shape: f32[2,16,32], index: 0, kind: input, shape index: {}]
  %s1 = inlined_call_operand.hbm [shape: f32[9,32], index: 1, kind: input, shape index: {}]
  %s2 = inlined_call_operand.vmem [shape: f32[1,32], index: 2, kind: input, shape index: {}]
  %s3 = inlined_call_operand.vmem [shape: f32[1,32], index: 3, kind: input, shape index: {}]
  %s4 = inlined_call_operand.vmem [shape: f32[1,32], index: 4, kind: input, shape index: {}]
  %s5 = inlined_call_operand.vmem [shape: f32[1,32], index: 5, kind: input, shape index: {}]
  %s6 = inlined_call_operand.hbm [shape: f32[2,16,32], index: 6, kind: output, shape index: {}]
  %s7 = sld [smem:[#allocation0]]
  $region42: #{tpu_custom_call.1} parent=0
    _
  %s9 = ssub.s32 1, %s7
  %s10 = scalar_select 0, %s9, %s7
  $region1: #{tpu_custom_call.1} parent=0
    #allocation3 [shape = 'u8[16384]{0}', space=vmem, size = 0x4000, scoped, tag = 'input window, operand 0, single buffered']
    #allocation4 [shape = 's32[1]{0}', space=sflag, size = 0x4, scoped, tag = 'scoped memory for tpu_custom_call.1']
    #allocation5 [shape = 's32[1]{0}', space=sflag, size = 0x4, scoped, tag = 'scoped memory for tpu_custom_call.1']
    #allocation6 [shape = 'u8[8192]{0}', space=vmem, size = 0x2000, scoped, tag = 'input window, operand 1, single buffered']
    #allocation7 [shape = 's32[1]{0}', space=sflag, size = 0x4, scoped, tag = 'scoped memory for tpu_custom_call.1']
    #allocation8 [shape = 'u8[16384]{0}', space=vmem, size = 0x4000, scoped, tag = 'output window, operand 0, single buffered']
    %11 = vsyncpa [#allocation4], 0
    %12 = vsyncpa [#allocation7], 0
    %13 = vsyncpa [#allocation5], 0
    // Predicated region
    $region2: #{tpu_custom_call.1} parent=1 // pred_check
      _
    $region3: #{tpu_custom_call.1} parent=1 // pred_check_branch
      %15 = sbr.rel (0) target = $region5
    $region4: #{tpu_custom_call.1} parent=1 // pred_region
      %s17 = ssub.s32 512, 512
      %18 = vsyncadd [#allocation4], %s17
      %s19 = sshll.u32 [#allocation3], 4
      %s20 = int_to_ptr.vmem [resolvable:$true] %s19
      %25 = dma.hbm_to_vmem [thread:$0]  %s0, 512, %s20, [#allocation4], 128, 128, 8
    $region5: #{tpu_custom_call.1} parent=1 // pred_fallthru
      _
    // Predicated region
    $region6: #{tpu_custom_call.1} parent=1 // pred_check
      _
    $region7: #{tpu_custom_call.1} parent=1 // pred_check_branch
      %27 = sbr.rel (0) target = $region9
    $region8: #{tpu_custom_call.1} parent=1 // pred_region
      %s29 = ssub.s32 256, 256
      %30 = vsyncadd [#allocation7], %s29
      %s31 = sshll.u32 [#allocation6], 4
      %s32 = int_to_ptr.vmem [resolvable:$true] %s31
      %37 = dma.hbm_to_vmem [thread:$0]  %s1, 256, %s32, [#allocation7], 128, 128, 8
    $region9: #{tpu_custom_call.1} parent=1 // pred_fallthru
      _
    // Predicated region
    $region10: #{tpu_custom_call.1} parent=1 // pred_check
      _
    $region11: #{tpu_custom_call.1} parent=1 // pred_check_branch
      %39 = sbr.rel (0) target = $region13
    $region12: #{tpu_custom_call.1} parent=1 // pred_region
      _
    $region13: #{tpu_custom_call.1} parent=1 // pred_fallthru
      _
    // Predicated region
    $region14: #{tpu_custom_call.1} parent=1 // pred_check
      _
    $region15: #{tpu_custom_call.1} parent=1 // pred_check_branch
      %41 = sbr.rel (0) target = $region17
    $region16: #{tpu_custom_call.1} parent=1 // pred_region
      _
    $region17: #{tpu_custom_call.1} parent=1 // pred_fallthru
      _
    // Predicated region
    $region18: #{tpu_custom_call.1} parent=1 // pred_check
      _
    $region19: #{tpu_custom_call.1} parent=1 // pred_check_branch
      %43 = sbr.rel (0) target = $region21
    $region20: #{tpu_custom_call.1} parent=1 // pred_region
      _
    $region21: #{tpu_custom_call.1} parent=1 // pred_fallthru
      _
    // Predicated region
    $region22: #{tpu_custom_call.1} parent=1 // pred_check
      _
    $region23: #{tpu_custom_call.1} parent=1 // pred_check_branch
      %45 = sbr.rel (0) target = $region25
    $region24: #{tpu_custom_call.1} parent=1 // pred_region
      _
    $region25: #{tpu_custom_call.1} parent=1 // pred_fallthru
      _
    // Predicated region
    $region26: #{tpu_custom_call.1} parent=1 // pred_check
      _
    $region27: #{tpu_custom_call.1} parent=1 // pred_check_branch
      %47 = sbr.rel (0) target = $region29
    $region28: #{tpu_custom_call.1} parent=1 // pred_region
      %48 = dma.done [#allocation4], 512
    $region29: #{tpu_custom_call.1} parent=1 // pred_fallthru
      _
    // Predicated region
    $region30: #{tpu_custom_call.1} parent=1 // pred_check
      _
    $region31: #{tpu_custom_call.1} parent=1 // pred_check_branch
      %50 = sbr.rel (0) target = $region33
    $region32: #{tpu_custom_call.1} parent=1 // pred_region
      %51 = dma.done [#allocation7], 256
    $region33: #{tpu_custom_call.1} parent=1 // pred_fallthru
      _
    %v52 = vld [vmem:[#allocation3] sm:$0xff]
    %v53 = vld [vmem:[#allocation3 + $0x8] sm:$0xff]
    %v54 = vld [vmem:[#allocation3 + $0x10] sm:$0xff]
    %v55 = vld [vmem:[#allocation3 + $0x18] sm:$0xff]
    %vm56 = vcmask 257024
    %57 = vst.msk [vmem:[#allocation2] sm:$0xf] %vm56, 0.0
    %58 = vst.msk [vmem:[#allocation2 + $0x18] sm:$0xf] %vm56, 0.0
    %59 = vst.msk [vmem:[#allocation2 + $0x14] sm:$0xf] %vm56, 0.0
    %60 = vst.msk [vmem:[#allocation2 + $0x2c] sm:$0xf] %vm56, 0.0
    %vm61 = vcmask 261120
    %62 = vst.msk [vmem:[#allocation2 + $0x4] sm:$0xff] %vm61, %v52
    %63 = vst.msk [vmem:[#allocation2 + $0xc] sm:$0xff] %vm61, %v53
    %64 = vst.msk [vmem:[#allocation2 + $0x1c] sm:$0xff] %vm61, %v54
    %65 = vst.msk [vmem:[#allocation2 + $0x24] sm:$0xff] %vm61, %v55
    %v66 = vld [vmem:[%s2] sm:$0x1]
    %v68 = vlaneseq
    %v69 = vshrl.u32 %v68, 7
    %v70 = vsub.s32 0, %v69
    %v71 = vrot.slane %v66, %v70
    %v73 = vadd.f32 %v71, 0.0
    %v74 = vld [vmem:[#allocation2] sm:$0xff]
    %v75 = vld [vmem:[#allocation2 + $0x8] sm:$0xff]
    %v76 = vld [vmem:[#allocation2 + $0x18] sm:$0xff]
    %v77 = vld [vmem:[#allocation2 + $0x20] sm:$0xff]
    %v78 = vld [vmem:[#allocation6] sm:$0x1]
    %v79 = vlaneseq
    %v80 = vshrl.u32 %v79, 7
    %v81 = vsub.s32 0, %v80
    %v82 = vrot.slane %v78, %v81
    %v83 = vmul.f32 %v74, %v82
    %v84 = vmul.f32 %v75, %v82
    %v85 = vmul.f32 %v76, %v82
    %v86 = vmul.f32 %v77, %v82
    %v87 = vadd.f32 %v73, %v83
    %v88 = vadd.f32 %v73, %v84
    %v89 = vadd.f32 %v73, %v85
    %v90 = vadd.f32 %v73, %v86
    %v91 = vld [vmem:[#allocation2 + $0x1] sm:$0xff]
    %v92 = vld [vmem:[#allocation2 + $0x9] sm:$0xff]
    %v93 = vld [vmem:[#allocation2 + $0x19] sm:$0xff]
    %v94 = vld [vmem:[#allocation2 + $0x21] sm:$0xff]
    %v95 = vld [vmem:[#allocation6 + $0x1] sm:$0x1]
    %v96 = vlaneseq
    %v97 = vshrl.u32 %v96, 7
    %v98 = vsub.s32 0, %v97
    %v99 = vrot.slane %v95, %v98
    %v100 = vmul.f32 %v91, %v99
    %v101 = vmul.f32 %v92, %v99
    %v102 = vmul.f32 %v93, %v99
    %v103 = vmul.f32 %v94, %v99
    %v104 = vadd.f32 %v87, %v100
    %v105 = vadd.f32 %v88, %v101
    %v106 = vadd.f32 %v89, %v102
    %v107 = vadd.f32 %v90, %v103
    %v108 = vld [vmem:[#allocation2 + $0x2] sm:$0xff]
    %v109 = vld [vmem:[#allocation2 + $0xa] sm:$0xff]
    %v110 = vld [vmem:[#allocation2 + $0x1a] sm:$0xff]
    %v111 = vld [vmem:[#allocation2 + $0x22] sm:$0xff]
    %v112 = vld [vmem:[#allocation6 + $0x2] sm:$0x1]
    %v113 = vlaneseq
    %v114 = vshrl.u32 %v113, 7
    %v115 = vsub.s32 0, %v114
    %v116 = vrot.slane %v112, %v115
    %v117 = vmul.f32 %v108, %v116
    %v118 = vmul.f32 %v109, %v116
    %v119 = vmul.f32 %v110, %v116
    %v120 = vmul.f32 %v111, %v116
    %v121 = vadd.f32 %v104, %v117
    %v122 = vadd.f32 %v105, %v118
    %v123 = vadd.f32 %v106, %v119
    %v124 = vadd.f32 %v107, %v120
    %v125 = vld [vmem:[#allocation2 + $0x3] sm:$0xff]
    %v126 = vld [vmem:[#allocation2 + $0xb] sm:$0xff]
    %v127 = vld [vmem:[#allocation2 + $0x1b] sm:$0xff]
    %v128 = vld [vmem:[#allocation2 + $0x23] sm:$0xff]
    %v129 = vld [vmem:[#allocation6 + $0x3] sm:$0x1]
    %v130 = vlaneseq
    %v131 = vshrl.u32 %v130, 7
    %v132 = vsub.s32 0, %v131
    %v133 = vrot.slane %v129, %v132
    %v134 = vmul.f32 %v125, %v133
    %v135 = vmul.f32 %v126, %v133
    %v136 = vmul.f32 %v127, %v133
    %v137 = vmul.f32 %v128, %v133
    %v138 = vadd.f32 %v121, %v134
    %v139 = vadd.f32 %v122, %v135
    %v140 = vadd.f32 %v123, %v136
    %v141 = vadd.f32 %v124, %v137
    %v142 = vld [vmem:[#allocation2 + $0x4] sm:$0xff]
    %v143 = vld [vmem:[#allocation2 + $0xc] sm:$0xff]
    %v144 = vld [vmem:[#allocation2 + $0x1c] sm:$0xff]
    %v145 = vld [vmem:[#allocation2 + $0x24] sm:$0xff]
    %v146 = vld [vmem:[#allocation6 + $0x4] sm:$0x1]
    %v147 = vlaneseq
    %v148 = vshrl.u32 %v147, 7
    %v149 = vsub.s32 0, %v148
    %v150 = vrot.slane %v146, %v149
    %v151 = vmul.f32 %v142, %v150
    %v152 = vmul.f32 %v143, %v150
    %v153 = vmul.f32 %v144, %v150
    %v154 = vmul.f32 %v145, %v150
    %v155 = vadd.f32 %v138, %v151
    %v156 = vadd.f32 %v139, %v152
    %v157 = vadd.f32 %v140, %v153
    %v158 = vadd.f32 %v141, %v154
    %v159 = vld [vmem:[#allocation2 + $0x5] sm:$0xff]
    %v160 = vld [vmem:[#allocation2 + $0xd] sm:$0xff]
    %v161 = vld [vmem:[#allocation2 + $0x1d] sm:$0xff]
    %v162 = vld [vmem:[#allocation2 + $0x25] sm:$0xff]
    %v163 = vld [vmem:[#allocation6 + $0x5] sm:$0x1]
    %v164 = vlaneseq
    %v165 = vshrl.u32 %v164, 7
    %v166 = vsub.s32 0, %v165
    %v167 = vrot.slane %v163, %v166
    %v168 = vmul.f32 %v159, %v167
    %v169 = vmul.f32 %v160, %v167
    %v170 = vmul.f32 %v161, %v167
    %v171 = vmul.f32 %v162, %v167
    %v172 = vadd.f32 %v155, %v168
    %v173 = vadd.f32 %v156, %v169
    %v174 = vadd.f32 %v157, %v170
    %v175 = vadd.f32 %v158, %v171
    %v176 = vld [vmem:[#allocation2 + $0x6] sm:$0xff]
    %v177 = vld [vmem:[#allocation2 + $0xe] sm:$0xff]
    %v178 = vld [vmem:[#allocation2 + $0x1e] sm:$0xff]
    %v179 = vld [vmem:[#allocation2 + $0x26] sm:$0xff]
    %v180 = vld [vmem:[#allocation6 + $0x6] sm:$0x1]
    %v181 = vlaneseq
    %v182 = vshrl.u32 %v181, 7
    %v183 = vsub.s32 0, %v182
    %v184 = vrot.slane %v180, %v183
    %v185 = vmul.f32 %v176, %v184
    %v186 = vmul.f32 %v177, %v184
    %v187 = vmul.f32 %v178, %v184
    %v188 = vmul.f32 %v179, %v184
    %v189 = vadd.f32 %v172, %v185
    %v190 = vadd.f32 %v173, %v186
    %v191 = vadd.f32 %v174, %v187
    %v192 = vadd.f32 %v175, %v188
    %v193 = vld [vmem:[#allocation2 + $0x7] sm:$0xff]
    %v194 = vld [vmem:[#allocation2 + $0xf] sm:$0xff]
    %v195 = vld [vmem:[#allocation2 + $0x1f] sm:$0xff]
    %v196 = vld [vmem:[#allocation2 + $0x27] sm:$0xff]
    %v197 = vld [vmem:[#allocation6 + $0x7] sm:$0x1]
    %v198 = vlaneseq
    %v199 = vshrl.u32 %v198, 7
    %v200 = vsub.s32 0, %v199
    %v201 = vrot.slane %v197, %v200
    %v202 = vmul.f32 %v193, %v201
    %v203 = vmul.f32 %v194, %v201
    %v204 = vmul.f32 %v195, %v201
    %v205 = vmul.f32 %v196, %v201
    %v206 = vadd.f32 %v189, %v202
    %v207 = vadd.f32 %v190, %v203
    %v208 = vadd.f32 %v191, %v204
    %v209 = vadd.f32 %v192, %v205
    %v210 = vld [vmem:[#allocation2 + $0x10] sm:$0xff]
    %v211 = vld [vmem:[#allocation2 + $0x28] sm:$0xff]
    %v212 = vld [vmem:[#allocation6 + $0x8] sm:$0x1]
    %v213 = vlaneseq
    %v214 = vshrl.u32 %v213, 7
    %v215 = vsub.s32 0, %v214
    %v216 = vrot.slane %v212, %v215
    %v217 = vmul.f32 %v75, %v216
    %v218 = vmul.f32 %v210, %v216
    %v219 = vmul.f32 %v77, %v216
    %v220 = vmul.f32 %v211, %v216
    %v221 = vadd.f32 %v206, %v217
    %v222 = vadd.f32 %v207, %v218
    %v223 = vadd.f32 %v208, %v219
    %v224 = vadd.f32 %v209, %v220
    %v225 = vmax.f32 %v221, 0.0
    %v226 = vmax.f32 %v222, 0.0
    %v227 = vmax.f32 %v223, 0.0
    %v228 = vmax.f32 %v224, 0.0
    %v229 = vld [vmem:[%s3] sm:$0x1]
    %v231 = vlaneseq
    %v232 = vshrl.u32 %v231, 7
    %v233 = vsub.s32 0, %v232
    %v234 = vrot.slane %v229, %v233
    %v236 = vmul.f32 %v52, %v234
    %v237 = vmul.f32 %v53, %v234
    %v238 = vmul.f32 %v54, %v234
    %v239 = vmul.f32 %v55, %v234
    %v240 = vld [vmem:[%s4] sm:$0x1]
    %v242 = vlaneseq
    %v243 = vshrl.u32 %v242, 7
    %v244 = vsub.s32 0, %v243
    %v245 = vrot.slane %v240, %v244
    %v247 = vmul.f32 %v225, %v245
    %v248 = vmul.f32 %v226, %v245
    %v249 = vmul.f32 %v227, %v245
    %v250 = vmul.f32 %v228, %v245
    %v251 = vadd.f32 %v236, %v247
    %v252 = vadd.f32 %v237, %v248
    %v253 = vadd.f32 %v238, %v249
    %v254 = vadd.f32 %v239, %v250
    %v255 = vld [vmem:[%s5] sm:$0x1]
    %v257 = vlaneseq
    %v258 = vshrl.u32 %v257, 7
    %v259 = vsub.s32 0, %v258
    %v260 = vrot.slane %v255, %v259
    %v262 = vadd.f32 %v251, %v260
    %v263 = vadd.f32 %v252, %v260
    %v264 = vadd.f32 %v253, %v260
    %v265 = vadd.f32 %v254, %v260
    %266 = vst.msk [vmem:[#allocation8] sm:$0xff] %vm61, %v262
    %267 = vst.msk [vmem:[#allocation8 + $0x8] sm:$0xff] %vm61, %v263
    %268 = vst.msk [vmem:[#allocation8 + $0x10] sm:$0xff] %vm61, %v264
    %269 = vst.msk [vmem:[#allocation8 + $0x18] sm:$0xff] %vm61, %v265
    // Predicated region
    $region34: #{tpu_custom_call.1} parent=1 // pred_check
      _
    $region35: #{tpu_custom_call.1} parent=1 // pred_check_branch
      %271 = sbr.rel (0) target = $region37
    $region36: #{tpu_custom_call.1} parent=1 // pred_region
      %s273 = ssub.s32 512, 512
      %274 = vsyncadd [#allocation5], %s273
      %s275 = sshll.u32 [#allocation8], 4
      %s276 = int_to_ptr.vmem [resolvable:$true] %s275
      %281 = dma.vmem_to_hbm [thread:$0]  %s276, 512, %s6, [#allocation5], 128, 128, 8
    $region37: #{tpu_custom_call.1} parent=1 // pred_fallthru
      _
    // Predicated region
    $region38: #{tpu_custom_call.1} parent=1 // pred_check
      _
    $region39: #{tpu_custom_call.1} parent=1 // pred_check_branch
      %283 = sbr.rel (0) target = $region41
    $region40: #{tpu_custom_call.1} parent=1 // pred_region
      %284 = dma.done [#allocation5], 512
    $region41: #{tpu_custom_call.1} parent=1 // pred_fallthru
      _
    %285 = vsyncpa [#allocation4], 1
    %286 = vsyncpa [#allocation7], 1
    %287 = vsyncpa [#allocation5], 1

</llo_original>
